<compile_context>
chip_gen: v5e
topology: v5e:2x2
jax: 0.10.0
libtpu: 0.0.40
codegen_flags: <defaults>
</compile_context>

<pallas_src>
import jax
import jax.numpy as jnp
from jax import lax
from jax.experimental import pallas as pl
from jax.experimental.pallas import tpu as pltpu

_LANE = 128


def _linear_kernel(x_ref, wt_ref, b_ref, o_ref):
    # y = x @ W^T + b, with W already transposed/padded to (D, C_pad):
    # straight (M,K)x(K,N) contraction on the MXU, f32 accumulation.
    y = lax.dot_general(
        x_ref[...],                         # (B, D)
        wt_ref[...],                        # (D, C_pad)
        dimension_numbers=(((1,), (0,)), ((), ())),
        preferred_element_type=jnp.float32,
    )
    # f32 epilogue, single cast at the (lane-dense) store.
    o_ref[...] = (y + b_ref[...]).astype(o_ref.dtype)


def simple_nn_forward(x, weight, bias):
    """Pallas equivalent of SimpleNN.forward: nn.Linear(input_size, num_classes)."""
    B, D = x.shape
    C, D2 = weight.shape
    assert D == D2

    # One-time (static-weight) HBM-side transforms:
    #  * transpose to (D, C): guarantees the clean MXU path, no XLU usage.
    #  * pad the class (lane) dim up to a 128 multiple: unmasked lane-dense
    #    output stores inside the kernel; sliced back below.
    c_pad = max(_LANE, ((C + _LANE - 1) // _LANE) * _LANE)
    w_t = jnp.pad(weight.T, ((0, 0), (0, c_pad - C)))          # (D, C_pad)
    b_pad = jnp.pad(bias, (0, c_pad - C)).reshape(1, c_pad)    # (1, C_pad)

    cost = pl.CostEstimate(
        flops=2 * B * D * c_pad,
        transcendentals=0,
        bytes_accessed=(x.size + w_t.size + b_pad.size + B * c_pad) * 4,
    )

    # Grid-less call: whole arrays land in VMEM once; no pipeline scaffolding.
    # TODO(synk): for realistic (large) shapes reintroduce an MXU-aligned grid:
    # bf16 inputs + f32 VMEM accumulator, pl.when-gated bias/cast on the last K
    # step, 256-multiple N/K tiles on v6e/v7x (128 on v5e), batch/N axes marked
    # "parallel" (needed for v7x's 2 TCs), and VMEM/double-buffer budget
    # re-derived for v7x's 64 MiB (vmem_limit_bytes if needed).
    out_padded = pl.pallas_call(
        _linear_kernel,
        out_shape=jax.ShapeDtypeStruct((B, c_pad), x.dtype),
        in_specs=[
            pl.BlockSpec(memory_space=pltpu.MemorySpace.VMEM),
            pl.BlockSpec(memory_space=pltpu.MemorySpace.VMEM),
            pl.BlockSpec(memory_space=pltpu.MemorySpace.VMEM),
        ],
        out_specs=pl.BlockSpec(memory_space=pltpu.MemorySpace.VMEM),
        cost_estimate=cost,
    )(x, w_t, b_pad)

    # Slice the lane padding back off in the wrapper (cheap XLA slice).
    return out_padded[:, :C]


def reference_forward(x, weight, bias):
    return x @ weight.T + bias


if __name__ == "__main__":
    # Small shapes consistent with the module: SimpleNN(input_size=32, num_classes=8)
    batch, input_size, num_classes = 2, 32, 8

    key = jax.random.PRNGKey(0)
    kx, kw, kb = jax.random.split(key, 3)

    x = jax.random.normal(kx, (batch, input_size), dtype=jnp.float32)
    # Deterministic "init" mimicking nn.Linear's uniform(-1/sqrt(D), 1/sqrt(D))
    bound = 1.0 / jnp.sqrt(jnp.float32(input_size))
    weight = jax.random.uniform(kw, (num_classes, input_size),
                                minval=-bound, maxval=bound, dtype=jnp.float32)
    bias = jax.random.uniform(kb, (num_classes,),
                              minval=-bound, maxval=bound, dtype=jnp.float32)

    out = simple_nn_forward(x, weight, bias)
    out = jax.block_until_ready(out)

    ref = reference_forward(x, weight, bias)
    assert out.shape == (batch, num_classes)
    assert jnp.allclose(out, ref, atol=1e-5, rtol=1e-5)

    print("KERNEL_OK")
</pallas_src>

<mosaic_0001>
module attributes {stable_mosaic.version = 11 : i64} {
  func.func @_linear_kernel(%arg0: memref<2x32xf32, #tpu.memory_space<vmem>>, %arg1: memref<32x128xf32, #tpu.memory_space<vmem>>, %arg2: memref<1x128xf32, #tpu.memory_space<vmem>>, %arg3: memref<2x128xf32, #tpu.memory_space<vmem>>) attributes {dimension_semantics = [], scalar_prefetch = 0 : i64, scratch_operands = 0 : i64, tpu.core_type = #tpu.core_type<tc>} {
    %c0 = arith.constant 0 : index
    %c0_0 = arith.constant 0 : index
    %0 = vector.load %arg0[%c0, %c0_0] : memref<2x32xf32, #tpu.memory_space<vmem>>, vector<2x32xf32>
    %c0_1 = arith.constant 0 : index
    %c0_2 = arith.constant 0 : index
    %1 = vector.load %arg1[%c0_1, %c0_2] : memref<32x128xf32, #tpu.memory_space<vmem>>, vector<32x128xf32>
    %cst = arith.constant dense<0.000000e+00> : vector<2x128xf32>
    %2 = tpu.matmul %0, %1, %cst {dimension_numbers = #tpu.dot_dimension_numbers<[1], [0], [0], [1], [0, 0, 1, 1], [], []>} : vector<2x32xf32>, vector<32x128xf32>, vector<2x128xf32> -> vector<2x128xf32>
    %c0_3 = arith.constant 0 : index
    %c0_4 = arith.constant 0 : index
    %3 = vector.load %arg2[%c0_3, %c0_4] : memref<1x128xf32, #tpu.memory_space<vmem>>, vector<1x128xf32>
    %4 = vector.broadcast %3 : vector<1x128xf32> to vector<2x128xf32>
    %5 = arith.addf %2, %4 : vector<2x128xf32>
    %c0_5 = arith.constant 0 : index
    %c0_6 = arith.constant 0 : index
    %6 = vector.load %arg3[%c0_5, %c0_6] : memref<2x128xf32, #tpu.memory_space<vmem>>, vector<2x128xf32>
    tpu.vector_store %arg3[%c0_5, %c0_6], %5 {strides = array<i32>} : memref<2x128xf32, #tpu.memory_space<vmem>>, vector<2x128xf32>,
    return
  }
}

</mosaic_0001>

<llo_original>
// kernel: tpu_custom_call.1
$region0: #{tpu_custom_call.1}
  #allocation0 [shape = 'u32[]', space=smem, size = 0x4, offset = 0x4, fixed_abs, tag = 'smem constant byte address 0x4 - core index']
  #allocation1 [shape = 'u32[72,128]{1,0:T(1,128)}', space=vmem, size = 0x9000, scoped, tag = 'internal scratch']
  %s0 = inlined_call_operand.hbm [shape: f32[2,32], index: 0, kind: input, shape index: {}]
  %s1 = inlined_call_operand.hbm [shape: f32[32,128], index: 1, kind: input, shape index: {}]
  %s2 = inlined_call_operand.vmem [shape: f32[1,128], index: 2, kind: input, shape index: {}]
  %s3 = inlined_call_operand.hbm [shape: f32[2,128], index: 3, kind: output, shape index: {}]
  %s4 = sld [smem:[#allocation0]]
  $region30: #{tpu_custom_call.1} parent=0
    _
  %s6 = ssub.s32 1, %s4
  %s7 = scalar_select 0, %s6, %s4
  $region1: #{tpu_custom_call.1} parent=0
    #allocation2 [shape = 'u8[1024]{0}', space=vmem, size = 0x400, scoped, tag = 'input window, operand 0, single buffered']
    #allocation3 [shape = 's32[1]{0}', space=sflag, size = 0x4, scoped, tag = 'scoped memory for tpu_custom_call.1']
    #allocation4 [shape = 's32[1]{0}', space=sflag, size = 0x4, scoped, tag = 'scoped memory for tpu_custom_call.1']
    #allocation5 [shape = 'u8[16384]{0}', space=vmem, size = 0x4000, scoped, tag = 'input window, operand 1, single buffered']
    #allocation6 [shape = 's32[1]{0}', space=sflag, size = 0x4, scoped, tag = 'scoped memory for tpu_custom_call.1']
    #allocation7 [shape = 'u8[1024]{0}', space=vmem, size = 0x400, scoped, tag = 'output window, operand 0, single buffered']
    %8 = vsyncpa [#allocation3], 0
    %9 = vsyncpa [#allocation6], 0
    %10 = vsyncpa [#allocation4], 0
    // Predicated region
    $region2: #{tpu_custom_call.1} parent=1 // pred_check
      _
    $region3: #{tpu_custom_call.1} parent=1 // pred_check_branch
      %12 = sbr.rel (0) target = $region5
    $region4: #{tpu_custom_call.1} parent=1 // pred_region
      %14 = vsyncadd [#allocation3], 0
      %s16 = sshll.u32 %s0, 4
      %s17 = int_to_ptr.hbm [resolvable:$true] %s16
      %s18 = sshll.u32 [#allocation2], 4
      %s19 = int_to_ptr.vmem [resolvable:$true] %s18
      %21 = dma.hbm_to_vmem [thread:$0]  %s17, 32, %s19, [#allocation3]
    $region5: #{tpu_custom_call.1} parent=1 // pred_fallthru
      _
    // Predicated region
    $region6: #{tpu_custom_call.1} parent=1 // pred_check
      _
    $region7: #{tpu_custom_call.1} parent=1 // pred_check_branch
      %23 = sbr.rel (0) target = $region9
    $region8: #{tpu_custom_call.1} parent=1 // pred_region
      %25 = vsyncadd [#allocation6], 0
      %s26 = sshll.u32 %s1, 4
      %s27 = int_to_ptr.hbm [resolvable:$true] %s26
      %s28 = sshll.u32 [#allocation5], 4
      %s29 = int_to_ptr.vmem [resolvable:$true] %s28
      %34 = dma.hbm_to_vmem [thread:$0]  %s27, 512, %s29, [#allocation6], 128, 128, 8
    $region9: #{tpu_custom_call.1} parent=1 // pred_fallthru
      _
    // Predicated region
    $region10: #{tpu_custom_call.1} parent=1 // pred_check
      _
    $region11: #{tpu_custom_call.1} parent=1 // pred_check_branch
      %36 = sbr.rel (0) target = $region13
    $region12: #{tpu_custom_call.1} parent=1 // pred_region
      _
    $region13: #{tpu_custom_call.1} parent=1 // pred_fallthru
      _
    // Predicated region
    $region14: #{tpu_custom_call.1} parent=1 // pred_check
      _
    $region15: #{tpu_custom_call.1} parent=1 // pred_check_branch
      %38 = sbr.rel (0) target = $region17
    $region16: #{tpu_custom_call.1} parent=1 // pred_region
      %40 = dma.done [#allocation3], 32
    $region17: #{tpu_custom_call.1} parent=1 // pred_fallthru
      _
    // Predicated region
    $region18: #{tpu_custom_call.1} parent=1 // pred_check
      _
    $region19: #{tpu_custom_call.1} parent=1 // pred_check_branch
      %42 = sbr.rel (0) target = $region21
    $region20: #{tpu_custom_call.1} parent=1 // pred_region
      %44 = dma.done [#allocation6], 512
    $region21: #{tpu_custom_call.1} parent=1 // pred_fallthru
      _
    %v45 = vld [vmem:[#allocation2] sm:$0x3]
    %v46 = vld [vmem:[#allocation5] sm:$0xff]
    %v47 = vld [vmem:[#allocation5 + $0x8] sm:$0xff]
    %v48 = vld [vmem:[#allocation5 + $0x10] sm:$0xff]
    %v49 = vld [vmem:[#allocation5 + $0x18] sm:$0xff]
    %v50 = vld [vmem:[%s2] sm:$0x1]
    %v52 = vperm.slane %v50, 0
    %vm54 = vcmask 261120
    %v56 = vsel %vm54, %v45, 0
    %58 = vmatpush.msra.mxu0 0.0
    %59 = vmatpush.msra.mxu0 0.0
    %60 = vmatpush.msra.mxu0 0.0
    %61 = vmatpush.msra.mxu0 0.0
    %62 = vmatpush.msra.mxu0 0.0
    %63 = vmatpush.msra.mxu0 0.0
    %64 = vmatpush.msra.mxu0 0.0
    %65 = vmatpush.msra.mxu0 0.0
    %66 = vmatpush.msra.mxu0 0.0
    %67 = vmatpush.msra.mxu0 0.0
    %68 = vmatpush.msra.mxu0 0.0
    %69 = vmatpush.msra.mxu0 0.0
    %70 = vmatpush.msra.mxu0 %v49
    %71 = vmatpush.msra.mxu0 %v48
    %72 = vmatpush.msra.mxu0 %v47
    %73 = vmatpush.msra.mxu0 %v46
    %74 = vmatmul.f32.gmra.mxu0 %v56
    %v75 = vpop.f32.mrf.mxu0
    %v76 = vadd.f32 %v52, %v75
    %77 = vdwg.mxu0
    %78 = vst [vmem:[#allocation7] sm:$0x3] %v76
    // Predicated region
    $region22: #{tpu_custom_call.1} parent=1 // pred_check
      _
    $region23: #{tpu_custom_call.1} parent=1 // pred_check_branch
      %80 = sbr.rel (0) target = $region25
    $region24: #{tpu_custom_call.1} parent=1 // pred_region
      %82 = vsyncadd [#allocation4], 0
      %s84 = sshll.u32 [#allocation7], 4
      %s85 = int_to_ptr.vmem [resolvable:$true] %s84
      %s86 = sshll.u32 %s3, 4
      %s87 = int_to_ptr.hbm [resolvable:$true] %s86
      %89 = dma.vmem_to_hbm [thread:$0]  %s85, 32, %s87, [#allocation4]
    $region25: #{tpu_custom_call.1} parent=1 // pred_fallthru
      _
    // Predicated region
    $region26: #{tpu_custom_call.1} parent=1 // pred_check
      _
    $region27: #{tpu_custom_call.1} parent=1 // pred_check_branch
      %91 = sbr.rel (0) target = $region29
    $region28: #{tpu_custom_call.1} parent=1 // pred_region
      %93 = dma.done [#allocation4], 32
    $region29: #{tpu_custom_call.1} parent=1 // pred_fallthru
      _
    %94 = vsyncpa [#allocation3], 1
    %95 = vsyncpa [#allocation6], 1
    %96 = vsyncpa [#allocation4], 1

</llo_original>
